<compile_context>
chip_gen: v6e
topology: v6e:2x2x1
jax: 0.10.0
libtpu: 0.0.40
codegen_flags: <defaults>
</compile_context>

<pallas_src>
import functools

import jax
import jax.numpy as jnp
from jax import lax
from jax.experimental import pallas as pl
from jax.experimental.pallas import tpu as pltpu

_OUT_PAD = 16          # class axis padded 10 -> 16 (sublane-aligned; 8x fewer write bytes than 128)
_NEG_BIG = -1e30       # padded-logit bias -> exp(pad - m) == 0 exactly, softmax unchanged
_MAX_TB = 4096         # max batch tile (lane width of the class-major output)
_LANE = 128
_SINGLE_TILE_MAX = 256  # batches up to this run as a single tile (grid == 1)


def _round_up(x, m):
    return ((x + m - 1) // m) * m


def _cdiv(a, b):
    return -(-a // b)


def _mlp_kernel(x_ref, w1_ref, b1_ref, w2_ref, b2_ref, o_ref):
    # Class-major (transposed) computation: the batch lives on the lane axis, so the
    # (OUT_PAD, TB) output store is lane-dense and 8x smaller than a (TB, 128) store.
    x = x_ref[...]                                               # (TB, n_in)

    # h^T = w1^T @ x^T : contract w1 dim 0 with x dim 1 -> (n_h, TB)  (MXU, trans_a)
    h = lax.dot_general(w1_ref[...], x, (((0,), (1,)), ((), ())),
                        preferred_element_type=jnp.float32)
    h = jnp.maximum(h + b1_ref[...], 0.0)                        # bias (n_h, 1), ReLU
    h = h.astype(w2_ref.dtype)

    # logits^T = w2^T @ h^T : contract both dim 0 -> (OUT_PAD, TB)
    logits = lax.dot_general(w2_ref[...], h, (((0,), (0,)), ((), ())),
                             preferred_element_type=jnp.float32) + b2_ref[...]

    # Numerically stable softmax over the (sublane) class axis; padded rows give exp == 0.
    m = jnp.max(logits, axis=0, keepdims=True)                   # (1, TB)
    e = jnp.exp(logits - m)
    s = jnp.sum(e, axis=0, keepdims=True)
    # Exact division: approx reciprocal previously broke the 1e-5 reference tolerance.
    o_ref[...] = (e / s).astype(o_ref.dtype)


@functools.partial(jax.jit, static_argnames=("cast_inputs_bf16", "small_batch_xla"))
def mlp_forward(x, w1, b1, w2, b2, *, cast_inputs_bf16=False, small_batch_xla=False):
    """x:(B,64), w1:(64,n_h), b1:(1,n_h), w2:(n_h,10), b2:(1,10) -> (B,10) probs."""
    B, n_in = x.shape
    n_h = w1.shape[1]
    n_out = w2.shape[1]
    assert n_out <= _OUT_PAD

    # Optional fused-XLA fast path for tiny batches (kernel launch overhead dominates).
    if small_batch_xla and B <= 64:
        h = jnp.maximum(x @ w1 + b1, 0.0)
        return jax.nn.softmax(h @ w2 + b2, axis=1)

    # --- wrapper-side layout prep --------------------------------------------
    # Class axis padded to 16 (zero weight cols, -1e30 bias); biases as column vectors.
    w2_p = jnp.pad(w2, ((0, 0), (0, _OUT_PAD - n_out)))
    b2_p = jnp.pad(b2, ((0, 0), (0, _OUT_PAD - n_out)), constant_values=_NEG_BIG)
    b1_c = jnp.reshape(b1, (n_h, 1))
    b2_c = jnp.reshape(b2_p, (_OUT_PAD, 1))

    x_c, w1_c = x, w1
    if cast_inputs_bf16:
        # Halves the x HBM read bytes; matmuls still accumulate in f32.
        # Not default: ~1e-3 relative error vs. the f32 reference.
        x_c = x.astype(jnp.bfloat16)
        w1_c = w1.astype(jnp.bfloat16)
        w2_p = w2_p.astype(jnp.bfloat16)

    # --- batch tiling ----------------------------------------------------------
    # Small batches: single tile (rounded to 8 sublanes).  Larger batches: >= 2 tiles
    # so both v7x TensorCores get work, tile a multiple of 128 so the class-major
    # (16, TB) store stays lane-dense, and sized so the last tile is nearly full
    # (avoids up to ~2x padding waste for unlucky B).
    if B <= _SINGLE_TILE_MAX:
        TB = _round_up(B, 8)
    else:
        n_tiles = max(2, _cdiv(B, _MAX_TB))
        TB = _round_up(_cdiv(B, n_tiles), _LANE)
    Bp = _round_up(B, TB)
    x_p = jnp.pad(x_c, ((0, Bp - B), (0, 0))) if Bp != B else x_c

    grid = (Bp // TB,)

    in_bytes = (x_p.size * x_p.dtype.itemsize
                + w1_c.size * w1_c.dtype.itemsize + b1_c.size * 4
                + w2_p.size * w2_p.dtype.itemsize + b2_c.size * 4)
    cost = pl.CostEstimate(
        flops=2 * Bp * (n_in * n_h + n_h * _OUT_PAD),
        transcendentals=Bp * _OUT_PAD,
        bytes_accessed=in_bytes + _OUT_PAD * Bp * 4,
    )

    out = pl.pallas_call(
        _mlp_kernel,
        out_shape=jax.ShapeDtypeStruct((_OUT_PAD, Bp), jnp.float32),
        grid=grid,
        in_specs=[
            pl.BlockSpec((TB, n_in), lambda i: (i, 0)),          # streamed x tiles
            pl.BlockSpec((n_in, n_h), lambda i: (0, 0)),         # VMEM-resident weights
            pl.BlockSpec((n_h, 1), lambda i: (0, 0)),
            pl.BlockSpec((n_h, _OUT_PAD), lambda i: (0, 0)),
            pl.BlockSpec((_OUT_PAD, 1), lambda i: (0, 0)),
        ],
        out_specs=pl.BlockSpec((_OUT_PAD, TB), lambda i: (0, i)),
        compiler_params=pltpu.CompilerParams(
            dimension_semantics=("parallel",),                   # v7x: shard tiles over 2 TCs
        ),
        cost_estimate=cost,
    )(x_p, w1_c, b1_c, w2_p, b2_c)
    # TODO(synk): add pipeline_mode=pl.Buffered(3) on the x/out specs (few-% win on
    # v7x) once the target JAX version is confirmed to expose BlockSpec.pipeline_mode.

    # Drop padded classes / padded batch columns; back to row-major (B, n_out).
    return out[:n_out, :B].T


def init_params(key, n_in, n_h, n_out):
    # Deterministic init mimicking torch.nn.Linear's U(-1/sqrt(fan_in), 1/sqrt(fan_in)).
    k1, k2, k3, k4 = jax.random.split(key, 4)
    bound1 = 1.0 / jnp.sqrt(jnp.float32(n_in))
    bound2 = 1.0 / jnp.sqrt(jnp.float32(n_h))
    w1 = jax.random.uniform(k1, (n_in, n_h), jnp.float32, -bound1, bound1)
    b1 = jax.random.uniform(k2, (1, n_h), jnp.float32, -bound1, bound1)
    w2 = jax.random.uniform(k3, (n_h, n_out), jnp.float32, -bound2, bound2)
    b2 = jax.random.uniform(k4, (1, n_out), jnp.float32, -bound2, bound2)
    return w1, b1, w2, b2


if __name__ == "__main__":
    key = jax.random.PRNGKey(0)
    k_x, k_p = jax.random.split(key)

    B, N_IN, N_H, N_OUT = 8, 64, 32, 10
    x = jax.random.normal(k_x, (B, N_IN), jnp.float32)
    w1, b1, w2, b2 = init_params(k_p, N_IN, N_H, N_OUT)

    out = mlp_forward(x, w1, b1, w2, b2)
    out = jax.block_until_ready(out)

    # Reference check in plain JAX (same math as the PyTorch module).
    h_ref = jnp.maximum(x @ w1 + b1, 0.0)
    ref = jax.nn.softmax(h_ref @ w2 + b2, axis=1)
    assert out.shape == (B, N_OUT)
    assert jnp.allclose(out, ref, atol=1e-5, rtol=1e-5)
    assert jnp.allclose(jnp.sum(out, axis=1), 1.0, atol=1e-5)

    print("KERNEL_OK")
</pallas_src>

<mosaic_0001>
module attributes {stable_mosaic.version = 11 : i64} {
  func.func @_mlp_kernel(%arg0: i32, %arg1: memref<8x64xf32, #tpu.memory_space<vmem>>, %arg2: memref<64x32xf32, #tpu.memory_space<vmem>>, %arg3: memref<32x1xf32, #tpu.memory_space<vmem>>, %arg4: memref<32x16xf32, #tpu.memory_space<vmem>>, %arg5: memref<16x1xf32, #tpu.memory_space<vmem>>, %arg6: memref<16x8xf32, #tpu.memory_space<vmem>>) attributes {dimension_semantics = [#tpu.dimension_semantics<parallel>], iteration_bounds = array<i64: 1>, scalar_prefetch = 0 : i64, scratch_operands = 0 : i64, tpu.core_type = #tpu.core_type<tc>, window_params = [{transform_indices = @transform_0, window_bounds = array<i64: 8, 64>}, {pipeline_mode = #tpu.pipeline_mode<synchronous>, transform_indices = @transform_1, window_bounds = array<i64: 64, 32>}, {pipeline_mode = #tpu.pipeline_mode<synchronous>, transform_indices = @transform_2, window_bounds = array<i64: 32, 1>}, {pipeline_mode = #tpu.pipeline_mode<synchronous>, transform_indices = @transform_3, window_bounds = array<i64: 32, 16>}, {pipeline_mode = #tpu.pipeline_mode<synchronous>, transform_indices = @transform_4, window_bounds = array<i64: 16, 1>}, {transform_indices = @transform_5, window_bounds = array<i64: 16, 8>}]} {
    %c0 = arith.constant 0 : index
    %c0_0 = arith.constant 0 : index
    %0 = vector.load %arg1[%c0, %c0_0] : memref<8x64xf32, #tpu.memory_space<vmem>>, vector<8x64xf32>
    %c0_1 = arith.constant 0 : index
    %c0_2 = arith.constant 0 : index
    %1 = vector.load %arg2[%c0_1, %c0_2] : memref<64x32xf32, #tpu.memory_space<vmem>>, vector<64x32xf32>
    %cst = arith.constant dense<0.000000e+00> : vector<32x8xf32>
    %2 = tpu.matmul %1, %0, %cst {dimension_numbers = #tpu.dot_dimension_numbers<[0], [1], [1], [0], [0, 1, 1, 0], [], []>} : vector<64x32xf32>, vector<8x64xf32>, vector<32x8xf32> -> vector<32x8xf32>
    %c0_3 = arith.constant 0 : index
    %c0_4 = arith.constant 0 : index
    %3 = vector.load %arg3[%c0_3, %c0_4] : memref<32x1xf32, #tpu.memory_space<vmem>>, vector<32x1xf32>
    %4 = vector.broadcast %3 : vector<32x1xf32> to vector<32x8xf32>
    %5 = arith.addf %2, %4 : vector<32x8xf32>
    %cst_5 = arith.constant 0.000000e+00 : f32
    %6 = vector.broadcast %cst_5 : f32 to vector<32x8xf32>
    %7 = arith.maximumf %5, %6 : vector<32x8xf32>
    %c0_6 = arith.constant 0 : index
    %c0_7 = arith.constant 0 : index
    %8 = vector.load %arg4[%c0_6, %c0_7] : memref<32x16xf32, #tpu.memory_space<vmem>>, vector<32x16xf32>
    %cst_8 = arith.constant dense<0.000000e+00> : vector<16x8xf32>
    %9 = tpu.matmul %8, %7, %cst_8 {dimension_numbers = #tpu.dot_dimension_numbers<[0], [0], [1], [1], [0, 1, 1, 1], [], []>} : vector<32x16xf32>, vector<32x8xf32>, vector<16x8xf32> -> vector<16x8xf32>
    %c0_9 = arith.constant 0 : index
    %c0_10 = arith.constant 0 : index
    %10 = vector.load %arg5[%c0_9, %c0_10] : memref<16x1xf32, #tpu.memory_space<vmem>>, vector<16x1xf32>
    %11 = vector.broadcast %10 : vector<16x1xf32> to vector<16x8xf32>
    %12 = arith.addf %9, %11 : vector<16x8xf32>
    %cst_11 = arith.constant dense<0xFF800000> : vector<8xf32>
    %13 = vector.multi_reduction <maximumf>, %12, %cst_11 [0] : vector<16x8xf32> to vector<8xf32>
    %14 = vector.shape_cast %13 : vector<8xf32> to vector<1x8xf32>
    %15 = vector.broadcast %14 : vector<1x8xf32> to vector<16x8xf32>
    %16 = arith.subf %12, %15 : vector<16x8xf32>
    %17 = math.exp %16 : vector<16x8xf32>
    %cst_12 = arith.constant dense<0.000000e+00> : vector<8xf32>
    %18 = vector.multi_reduction <add>, %17, %cst_12 [0] : vector<16x8xf32> to vector<8xf32>
    %19 = vector.shape_cast %18 : vector<8xf32> to vector<1x8xf32>
    %20 = vector.broadcast %19 : vector<1x8xf32> to vector<16x8xf32>
    %21 = arith.divf %17, %20 : vector<16x8xf32>
    %c0_13 = arith.constant 0 : index
    %c0_14 = arith.constant 0 : index
    %22 = vector.load %arg6[%c0_13, %c0_14] : memref<16x8xf32, #tpu.memory_space<vmem>>, vector<16x8xf32>
    tpu.vector_store %arg6[%c0_13, %c0_14], %21 {strides = array<i32>} : memref<16x8xf32, #tpu.memory_space<vmem>>, vector<16x8xf32>,
    return
  }
  func.func @transform_0(%arg0: i32) -> (i32, i32) {
    %c0_i32 = arith.constant 0 : i32
    %c0_i32_0 = arith.constant 0 : i32
    return %arg0, %c0_i32 : i32, i32
  }
  func.func @transform_1(%arg0: i32) -> (i32, i32) {
    %c0_i32 = arith.constant 0 : i32
    %c0_i32_0 = arith.constant 0 : i32
    %c0_i32_1 = arith.constant 0 : i32
    return %c0_i32, %c0_i32_0 : i32, i32
  }
  func.func @transform_2(%arg0: i32) -> (i32, i32) {
    %c0_i32 = arith.constant 0 : i32
    %c0_i32_0 = arith.constant 0 : i32
    %c0_i32_1 = arith.constant 0 : i32
    return %c0_i32, %c0_i32_0 : i32, i32
  }
  func.func @transform_3(%arg0: i32) -> (i32, i32) {
    %c0_i32 = arith.constant 0 : i32
    %c0_i32_0 = arith.constant 0 : i32
    %c0_i32_1 = arith.constant 0 : i32
    return %c0_i32, %c0_i32_0 : i32, i32
  }
  func.func @transform_4(%arg0: i32) -> (i32, i32) {
    %c0_i32 = arith.constant 0 : i32
    %c0_i32_0 = arith.constant 0 : i32
    %c0_i32_1 = arith.constant 0 : i32
    return %c0_i32, %c0_i32_0 : i32, i32
  }
  func.func @transform_5(%arg0: i32) -> (i32, i32) {
    %c0_i32 = arith.constant 0 : i32
    %c0_i32_0 = arith.constant 0 : i32
    return %c0_i32, %arg0 : i32, i32
  }
}

</mosaic_0001>

<llo_original>
// kernel: mlp_forward.1
$region0: #{mlp_forward.1}
  #allocation0 [shape = 'u32[]', space=smem, size = 0x4, offset = 0x4, fixed_abs, tag = 'smem constant byte address 0x4 - core index']
  #allocation1 [shape = 'u32[144,128]{1,0:T(1,128)}', space=vmem, size = 0x12000, scoped, tag = 'internal scratch']
  %s0 = inlined_call_operand.vmem [shape: f32[8,64], index: 0, kind: input, shape index: {}]
  %s1 = inlined_call_operand.vmem [shape: f32[64,32], index: 1, kind: input, shape index: {}]
  %s2 = inlined_call_operand.vmem [shape: f32[32,1], index: 2, kind: input, shape index: {}]
  %s3 = inlined_call_operand.vmem [shape: f32[32,16], index: 3, kind: input, shape index: {}]
  %s4 = inlined_call_operand.vmem [shape: f32[16,1], index: 4, kind: input, shape index: {}]
  %s5 = inlined_call_operand.vmem [shape: f32[16,8], index: 5, kind: output, shape index: {}]
  %s6 = sld [smem:[#allocation0]]
  $region30: #{mlp_forward.1} parent=0
    _
  %s8 = ssub.s32 1, %s6
  %s9 = scalar_select 0, %s8, %s6
  // Predicated region
  $region2: #{mlp_forward.1} parent=0 // pred_check
    _
  $region3: #{mlp_forward.1} parent=0 // pred_check_branch
    %11 = sbr.rel (0) target = $region5
  $region4: #{mlp_forward.1} parent=0 // pred_region
    _
  $region5: #{mlp_forward.1} parent=0 // pred_fallthru
    _
  // Predicated region
  $region6: #{mlp_forward.1} parent=0 // pred_check
    _
  $region7: #{mlp_forward.1} parent=0 // pred_check_branch
    %13 = sbr.rel (0) target = $region9
  $region8: #{mlp_forward.1} parent=0 // pred_region
    _
  $region9: #{mlp_forward.1} parent=0 // pred_fallthru
    _
  // Predicated region
  $region10: #{mlp_forward.1} parent=0 // pred_check
    _
  $region11: #{mlp_forward.1} parent=0 // pred_check_branch
    %15 = sbr.rel (0) target = $region13
  $region12: #{mlp_forward.1} parent=0 // pred_region
    _
  $region13: #{mlp_forward.1} parent=0 // pred_fallthru
    _
  // Predicated region
  $region14: #{mlp_forward.1} parent=0 // pred_check
    _
  $region15: #{mlp_forward.1} parent=0 // pred_check_branch
    %17 = sbr.rel (0) target = $region17
  $region16: #{mlp_forward.1} parent=0 // pred_region
    _
  $region17: #{mlp_forward.1} parent=0 // pred_fallthru
    _
  // Predicated region
  $region18: #{mlp_forward.1} parent=0 // pred_check
    _
  $region19: #{mlp_forward.1} parent=0 // pred_check_branch
    %19 = sbr.rel (0) target = $region21
  $region20: #{mlp_forward.1} parent=0 // pred_region
    _
  $region21: #{mlp_forward.1} parent=0 // pred_fallthru
    _
  %v20 = vld [vmem:[%s0] sm:$0xff]
  %v21 = vld [vmem:[%s1] sm:$0xff]
  %v22 = vld [vmem:[%s1 + $0x8] sm:$0xff]
  %v23 = vld [vmem:[%s1 + $0x10] sm:$0xff]
  %v24 = vld [vmem:[%s1 + $0x18] sm:$0xff]
  %v25 = vld [vmem:[%s1 + $0x20] sm:$0xff]
  %v26 = vld [vmem:[%s1 + $0x28] sm:$0xff]
  %v27 = vld [vmem:[%s1 + $0x30] sm:$0xff]
  %v28 = vld [vmem:[%s1 + $0x38] sm:$0xff]
  %v29 = vld [vmem:[%s2] sm:$0xff]
  %v30 = vld [vmem:[%s2 + $0x8] sm:$0xff]
  %v31 = vld [vmem:[%s2 + $0x10] sm:$0xff]
  %v32 = vld [vmem:[%s2 + $0x18] sm:$0xff]
  %34 = vset.pattern.permute.xlu0 0
  %35 = vperm.xlu0 %34, %v29
  %v36 = vpop.permute.xlu0 %35
  %39 = vset.pattern.permute.xlu0 0
  %40 = vperm.xlu0 %39, %v30
  %v41 = vpop.permute.xlu0 %40
  %44 = vset.pattern.permute.xlu0 0
  %45 = vperm.xlu0 %44, %v31
  %v46 = vpop.permute.xlu0 %45
  %49 = vset.pattern.permute.xlu0 0
  %50 = vperm.xlu0 %49, %v32
  %v51 = vpop.permute.xlu0 %50
  %53 = vxpose.xlu0.b32.start [1/16] %v21, 128
  %54 = vxpose.xlu0.b32.cont [2/16] %v22, 128
  %55 = vxpose.xlu0.b32.cont [3/16] %v23, 128
  %56 = vxpose.xlu0.b32.cont [4/16] %v24, 128
  %57 = vxpose.xlu0.b32.cont [5/16] %v25, 128
  %58 = vxpose.xlu0.b32.cont [6/16] %v26, 128
  %59 = vxpose.xlu0.b32.cont [7/16] %v27, 128
  %60 = vxpose.xlu0.b32.cont [8/16] %v28, 128
  %61 = vxpose.xlu0.b32.cont [9/16] 0.0, 128
  %62 = vxpose.xlu0.b32.cont [10/16] 0.0, 128
  %63 = vxpose.xlu0.b32.cont [11/16] 0.0, 128
  %64 = vxpose.xlu0.b32.cont [12/16] 0.0, 128
  %65 = vxpose.xlu0.b32.cont [13/16] 0.0, 128
  %66 = vxpose.xlu0.b32.cont [14/16] 0.0, 128
  %67 = vxpose.xlu0.b32.cont [15/16] 0.0, 128
  %68 = vxpose.xlu0.b32.end [16/16] 0.0, 128
  %v69 = vpop.trf.xlu0
  %v70 = vpop.trf.xlu0
  %v71 = vpop.trf.xlu0
  %v72 = vpop.trf.xlu0
  %v73 = vpop.trf.xlu0
  %v74 = vpop.trf.xlu0
  %v75 = vpop.trf.xlu0
  %v76 = vpop.trf.xlu0
  %v77 = vpop.trf.xlu0
  %v78 = vpop.trf.xlu0
  %v79 = vpop.trf.xlu0
  %v80 = vpop.trf.xlu0
  %v81 = vpop.trf.xlu0
  %v82 = vpop.trf.xlu0
  %v83 = vpop.trf.xlu0
  %v84 = vpop.trf.xlu0
  %vm85 = vcmask 523264
  %v87 = vsel %vm85, %v69, 0
  %v90 = vsel %vm85, %v70, 0
  %v93 = vsel %vm85, %v71, 0
  %v96 = vsel %vm85, %v72, 0
  %v99 = vsel %vm85, %v20, 0
  %101 = vmatprep.subr.mxu0 0.0
  %102 = vmatpush1.xpose.msra.mxu0 0.0
  %103 = vmatprep.subr.mxu0 0.0
  %104 = vmatpush1.xpose.msra.mxu0 0.0
  %105 = vmatprep.subr.mxu0 0.0
  %106 = vmatpush1.xpose.msra.mxu0 0.0
  %107 = vmatprep.subr.mxu0 0.0
  %108 = vmatpush1.xpose.msra.mxu0 0.0
  %109 = vmatprep.subr.mxu0 0.0
  %110 = vmatpush1.xpose.msra.mxu0 0.0
  %111 = vmatprep.subr.mxu0 0.0
  %112 = vmatpush1.xpose.msra.mxu0 0.0
  %113 = vmatprep.subr.mxu0 0.0
  %114 = vmatpush1.xpose.msra.mxu0 0.0
  %115 = vmatprep.subr.mxu0 0.0
  %116 = vmatpush1.xpose.msra.mxu0 0.0
  %117 = vmatprep.subr.mxu0 0.0
  %118 = vmatpush1.xpose.msra.mxu0 0.0
  %119 = vmatprep.subr.mxu0 0.0
  %120 = vmatpush1.xpose.msra.mxu0 0.0
  %121 = vmatprep.subr.mxu0 0.0
  %122 = vmatpush1.xpose.msra.mxu0 0.0
  %123 = vmatprep.subr.mxu0 0.0
  %124 = vmatpush1.xpose.msra.mxu0 0.0
  %125 = vmatprep.subr.mxu0 0.0
  %126 = vmatpush1.xpose.msra.mxu0 0.0
  %127 = vmatprep.subr.mxu0 0.0
  %128 = vmatpush1.xpose.msra.mxu0 0.0
  %129 = vmatprep.subr.mxu0 0.0
  %130 = vmatpush1.xpose.msra.mxu0 0.0
  %131 = vmatprep.subr.mxu0 0.0
  %132 = vmatpush1.xpose.msra.mxu0 %v99
  %133 = vmatprep.subr.mxu0 0.0
  %134 = vmatpush2.xpose.msra.mxu0 0.0
  %135 = vmatprep.subr.mxu0 0.0
  %136 = vmatpush2.xpose.msra.mxu0 0.0
  %137 = vmatprep.subr.mxu0 0.0
  %138 = vmatpush2.xpose.msra.mxu0 0.0
  %139 = vmatprep.subr.mxu0 0.0
  %140 = vmatpush2.xpose.msra.mxu0 0.0
  %141 = vmatprep.subr.mxu0 0.0
  %142 = vmatpush2.xpose.msra.mxu0 0.0
  %143 = vmatprep.subr.mxu0 0.0
  %144 = vmatpush2.xpose.msra.mxu0 0.0
  %145 = vmatprep.subr.mxu0 0.0
  %146 = vmatpush2.xpose.msra.mxu0 0.0
  %147 = vmatprep.subr.mxu0 0.0
  %148 = vmatpush2.xpose.msra.mxu0 0.0
  %149 = vmatprep.subr.mxu0 0.0
  %150 = vmatpush2.xpose.msra.mxu0 0.0
  %151 = vmatprep.subr.mxu0 0.0
  %152 = vmatpush2.xpose.msra.mxu0 0.0
  %153 = vmatprep.subr.mxu0 0.0
  %154 = vmatpush2.xpose.msra.mxu0 0.0
  %155 = vmatprep.subr.mxu0 0.0
  %156 = vmatpush2.xpose.msra.mxu0 0.0
  %157 = vmatprep.subr.mxu0 0.0
  %158 = vmatpush2.xpose.msra.mxu0 0.0
  %159 = vmatprep.subr.mxu0 0.0
  %160 = vmatpush2.xpose.msra.mxu0 0.0
  %161 = vmatprep.subr.mxu0 0.0
  %162 = vmatpush2.xpose.msra.mxu0 0.0
  %163 = vmatprep.subr.mxu0 0.0
  %164 = vmatpush2.xpose.msra.mxu0 0.0
  %165 = vmatprep.mubr.f32.mxu0 0.0
  %166 = vmatmul.mubr.f32.gmra.mxu0 %v87
  %v167 = vpop.f32.mrf.mxu0
  %v168 = vadd.f32 %v36, %v167
  %v169 = vpop.f32.mrf.mxu0
  %170 = vmatprep.mubr.f32.mxu0 0.0
  %171 = vmatmul.mubr.f32.gmra.mxu0 %v90
  %v172 = vpop.f32.mrf.mxu0
  %v173 = vadd.f32 %v41, %v172
  %v174 = vpop.f32.mrf.mxu0
  %175 = vmatprep.mubr.f32.mxu0 0.0
  %176 = vmatmul.mubr.f32.gmra.mxu0 %v93
  %v177 = vpop.f32.mrf.mxu0
  %v178 = vadd.f32 %v46, %v177
  %v179 = vpop.f32.mrf.mxu0
  %180 = vmatprep.mubr.f32.mxu0 0.0
  %181 = vmatmul.mubr.f32.gmra.mxu0 %v96
  %v182 = vpop.f32.mrf.mxu0
  %v183 = vadd.f32 %v51, %v182
  %v184 = vpop.f32.mrf.mxu0
  %185 = vdwg.mxu0
  %v186 = vmax.f32 %v168, 0.0
  %v187 = vmax.f32 %v173, 0.0
  %v188 = vmax.f32 %v178, 0.0
  %v189 = vmax.f32 %v183, 0.0
  %v190 = vld [vmem:[%s3] sm:$0xff]
  %v191 = vld [vmem:[%s3 + $0x8] sm:$0xff]
  %v192 = vld [vmem:[%s3 + $0x10] sm:$0xff]
  %v193 = vld [vmem:[%s3 + $0x18] sm:$0xff]
  %v194 = vld [vmem:[%s4] sm:$0xff]
  %v195 = vld [vmem:[%s4 + $0x8] sm:$0xff]
  %197 = vset.pattern.permute.xlu0 0
  %198 = vperm.xlu0 %197, %v194
  %v199 = vpop.permute.xlu0 %198
  %202 = vset.pattern.permute.xlu0 0
  %203 = vperm.xlu0 %202, %v195
  %v204 = vpop.permute.xlu0 %203
  %206 = vxpose.xlu0.b32.start [1/16] %v190, 128
  %207 = vxpose.xlu0.b32.cont [2/16] %v191, 128
  %208 = vxpose.xlu0.b32.cont [3/16] %v192, 128
  %209 = vxpose.xlu0.b32.cont [4/16] %v193, 128
  %210 = vxpose.xlu0.b32.cont [5/16] 0.0, 128
  %211 = vxpose.xlu0.b32.cont [6/16] 0.0, 128
  %212 = vxpose.xlu0.b32.cont [7/16] 0.0, 128
  %213 = vxpose.xlu0.b32.cont [8/16] 0.0, 128
  %214 = vxpose.xlu0.b32.cont [9/16] 0.0, 128
  %215 = vxpose.xlu0.b32.cont [10/16] 0.0, 128
  %216 = vxpose.xlu0.b32.cont [11/16] 0.0, 128
  %217 = vxpose.xlu0.b32.cont [12/16] 0.0, 128
  %218 = vxpose.xlu0.b32.cont [13/16] 0.0, 128
  %219 = vxpose.xlu0.b32.cont [14/16] 0.0, 128
  %220 = vxpose.xlu0.b32.cont [15/16] 0.0, 128
  %221 = vxpose.xlu0.b32.end [16/16] 0.0, 128
  %v222 = vpop.trf.xlu0
  %v223 = vpop.trf.xlu0
  %v224 = vpop.trf.xlu0
  %v225 = vpop.trf.xlu0
  %v226 = vpop.trf.xlu0
  %v227 = vpop.trf.xlu0
  %v228 = vpop.trf.xlu0
  %v229 = vpop.trf.xlu0
  %v230 = vpop.trf.xlu0
  %v231 = vpop.trf.xlu0
  %v232 = vpop.trf.xlu0
  %v233 = vpop.trf.xlu0
  %v234 = vpop.trf.xlu0
  %v235 = vpop.trf.xlu0
  %v236 = vpop.trf.xlu0
  %v237 = vpop.trf.xlu0
  %vm238 = vcmask 261120
  %v240 = vsel %vm238, %v222, 0
  %v243 = vsel %vm238, %v223, 0
  %245 = vmatprep.subr.mxu0 0.0
  %246 = vmatpush1.msra.mxu0 0.0
  %247 = vmatprep.subr.mxu0 0.0
  %248 = vmatpush1.msra.mxu0 0.0
  %249 = vmatprep.subr.mxu0 0.0
  %250 = vmatpush1.msra.mxu0 0.0
  %251 = vmatprep.subr.mxu0 0.0
  %252 = vmatpush1.msra.mxu0 0.0
  %253 = vmatprep.subr.mxu0 0.0
  %254 = vmatpush1.msra.mxu0 0.0
  %255 = vmatprep.subr.mxu0 0.0
  %256 = vmatpush1.msra.mxu0 0.0
  %257 = vmatprep.subr.mxu0 0.0
  %258 = vmatpush1.msra.mxu0 0.0
  %259 = vmatprep.subr.mxu0 0.0
  %260 = vmatpush1.msra.mxu0 0.0
  %261 = vmatprep.subr.mxu0 0.0
  %262 = vmatpush1.msra.mxu0 0.0
  %263 = vmatprep.subr.mxu0 0.0
  %264 = vmatpush1.msra.mxu0 0.0
  %265 = vmatprep.subr.mxu0 0.0
  %266 = vmatpush1.msra.mxu0 0.0
  %267 = vmatprep.subr.mxu0 0.0
  %268 = vmatpush1.msra.mxu0 0.0
  %269 = vmatprep.subr.mxu0 0.0
  %270 = vmatpush1.msra.mxu0 %v189
  %271 = vmatprep.subr.mxu0 0.0
  %272 = vmatpush1.msra.mxu0 %v188
  %273 = vmatprep.subr.mxu0 0.0
  %274 = vmatpush1.msra.mxu0 %v187
  %275 = vmatprep.subr.mxu0 0.0
  %276 = vmatpush1.msra.mxu0 %v186
  %277 = vmatprep.subr.mxu0 0.0
  %278 = vmatpush2.msra.mxu0 0.0
  %279 = vmatprep.subr.mxu0 0.0
  %280 = vmatpush2.msra.mxu0 0.0
  %281 = vmatprep.subr.mxu0 0.0
  %282 = vmatpush2.msra.mxu0 0.0
  %283 = vmatprep.subr.mxu0 0.0
  %284 = vmatpush2.msra.mxu0 0.0
  %285 = vmatprep.subr.mxu0 0.0
  %286 = vmatpush2.msra.mxu0 0.0
  %287 = vmatprep.subr.mxu0 0.0
  %288 = vmatpush2.msra.mxu0 0.0
  %289 = vmatprep.subr.mxu0 0.0
  %290 = vmatpush2.msra.mxu0 0.0
  %291 = vmatprep.subr.mxu0 0.0
  %292 = vmatpush2.msra.mxu0 0.0
  %293 = vmatprep.subr.mxu0 0.0
  %294 = vmatpush2.msra.mxu0 0.0
  %295 = vmatprep.subr.mxu0 0.0
  %296 = vmatpush2.msra.mxu0 0.0
  %297 = vmatprep.subr.mxu0 0.0
  %298 = vmatpush2.msra.mxu0 0.0
  %299 = vmatprep.subr.mxu0 0.0
  %300 = vmatpush2.msra.mxu0 0.0
  %301 = vmatprep.subr.mxu0 0.0
  %302 = vmatpush2.msra.mxu0 0.0
  %303 = vmatprep.subr.mxu0 0.0
  %304 = vmatpush2.msra.mxu0 0.0
  %305 = vmatprep.subr.mxu0 0.0
  %306 = vmatpush2.msra.mxu0 0.0
  %307 = vmatprep.subr.mxu0 0.0
  %308 = vmatpush2.msra.mxu0 0.0
  %309 = vmatprep.mubr.f32.mxu0 0.0
  %310 = vmatmul.mubr.f32.gmra.mxu0 %v240
  %v311 = vpop.f32.mrf.mxu0
  %v312 = vadd.f32 %v199, %v311
  %v313 = vpop.f32.mrf.mxu0
  %314 = vmatprep.mubr.f32.mxu0 0.0
  %315 = vmatmul.mubr.f32.gmra.mxu0 %v243
  %v316 = vpop.f32.mrf.mxu0
  %v317 = vadd.f32 %v204, %v316
  %v318 = vpop.f32.mrf.mxu0
  %319 = vdwg.mxu0
  %vm320 = vcmask 64512
  %v321 = vsel %vm320, %v312, -inf
  %v322 = vsel %vm320, %v317, -inf
  %v323 = vmax.f32 %v321, %v322
  %v324 = vrot.slane %v323, 4
  %v325 = vmax.f32 %v323, %v324
  %v326 = vrot.slane %v325, 2
  %v327 = vmax.f32 %v325, %v326
  %v328 = vrot.slane %v327, 1
  %v329 = vmax.f32 %v327, %v328
  %v330 = vsub.f32 %v312, %v329
  %v331 = vsub.f32 %v317, %v329
  %v332 = vmul.f32 %v330, 1.442695
  %v333 = vpow.pop %v332
  %v334 = vmul.f32 %v331, 1.442695
  %v335 = vpow.pop %v334
  %v336 = vsel %vm320, %v333, 0.0
  %v337 = vsel %vm320, %v335, 0.0
  %v338 = vadd.f32 %v336, %v337
  %v339 = vrot.slane %v338, 4
  %v340 = vadd.f32 %v338, %v339
  %v341 = vrot.slane %v340, 2
  %v342 = vadd.f32 %v340, %v341
  %v343 = vrot.slane %v342, 1
  %v344 = vadd.f32 %v342, %v343
  %v345 = vrcp.pop %v344
  %v346 = vmul.f32 %v333, %v345
  %v347 = vmul.f32 %v335, %v345
  %348 = vst.msk [vmem:[%s5] sm:$0xff] %vm320, %v346
  %349 = vst.msk [vmem:[%s5 + $0x8] sm:$0xff] %vm320, %v347
  // Predicated region
  $region22: #{mlp_forward.1} parent=0 // pred_check
    _
  $region23: #{mlp_forward.1} parent=0 // pred_check_branch
    %351 = sbr.rel (0) target = $region25
  $region24: #{mlp_forward.1} parent=0 // pred_region
    _
  $region25: #{mlp_forward.1} parent=0 // pred_fallthru
    _
  // Predicated region
  $region26: #{mlp_forward.1} parent=0 // pred_check
    _
  $region27: #{mlp_forward.1} parent=0 // pred_check_branch
    %353 = sbr.rel (0) target = $region29
  $region28: #{mlp_forward.1} parent=0 // pred_region
    _
  $region29: #{mlp_forward.1} parent=0 // pred_fallthru
    _

</llo_original>
